<compile_context>
chip_gen: v7x
topology: tpu7x:2x2x1
jax: 0.10.0
libtpu: 0.0.40
codegen_flags: <defaults>
</compile_context>

<pallas_src>
import functools

import numpy as np
import jax
import jax.numpy as jnp
from jax.experimental import pallas as pl
from jax.experimental.pallas import tpu as pltpu

BN_EPS = 1e-3  # nn.BatchNorm1d(..., eps=0.001)


def _round_up(x, m):
    return (x + m - 1) // m * m


def _decoder_nb_kernel(n_layers, n_chunks, chunk, approx_recip, z_ref, *refs):
    """Fused decoder kernel.

    refs layout (all full-array VMEM blocks except z and the outputs):
      per decoder layer l: w[l] (in, out) [BN folded, weight dtype], b[l] (1, out) f32
      then: w_scale (hidden, P_pad), b_scale (1, P_pad) f32,
            w_r     (hidden, P_pad), b_r     (1, P_pad) f32
      outputs: normalized (tb, P_pad), disperation (tb, P_pad)
    """
    nl2 = 2 * n_layers
    layer_refs = refs[:nl2]
    w_s_ref, b_s_ref, w_r_ref, b_r_ref = refs[nl2:nl2 + 4]
    norm_ref, disp_ref = refs[nl2 + 4:]

    # Hidden MLP: Linear (+ folded BatchNorm) + ReLU.  Dropout == identity (eval).
    h = z_ref[...].astype(jnp.float32)
    for l in range(n_layers):
        w, b = layer_refs[2 * l], layer_refs[2 * l + 1]
        acc = jnp.dot(h.astype(w.dtype), w[...], preferred_element_type=jnp.float32)
        h = jnp.maximum(acc + b[...], 0.0)
    h_mxu = h.astype(w_s_ref.dtype)
    tb = h.shape[0]

    # --- r head first, chunked: compute + exp + store so none of its intermediates
    #     stay live during the softmax pass (bounds vreg/VMEM pressure).
    for c in range(n_chunks):
        sl = slice(c * chunk, (c + 1) * chunk)
        r = jnp.dot(h_mxu, w_r_ref[:, sl],
                    preferred_element_type=jnp.float32) + b_r_ref[:, sl]
        disp_ref[:, sl] = jnp.exp(r).astype(disp_ref.dtype)

    # --- scale head: two-pass chunked softmax.
    # Pass 1: online running max / sum over feature chunks (only (tb,1) carries live).
    m = jnp.full((tb, 1), -jnp.inf, dtype=jnp.float32)
    s = jnp.zeros((tb, 1), dtype=jnp.float32)
    for c in range(n_chunks):
        sl = slice(c * chunk, (c + 1) * chunk)
        logits = jnp.dot(h_mxu, w_s_ref[:, sl],
                         preferred_element_type=jnp.float32) + b_s_ref[:, sl]
        m_new = jnp.maximum(m, jnp.max(logits, axis=1, keepdims=True))
        s = s * jnp.exp(m - m_new) + jnp.sum(jnp.exp(logits - m_new),
                                             axis=1, keepdims=True)
        m = m_new
    inv = pl.reciprocal(s, approx=True) if approx_recip else 1.0 / s
    # Pass 2: recompute (K = hidden is tiny), normalize, store per chunk.
    for c in range(n_chunks):
        sl = slice(c * chunk, (c + 1) * chunk)
        logits = jnp.dot(h_mxu, w_s_ref[:, sl],
                         preferred_element_type=jnp.float32) + b_s_ref[:, sl]
        norm_ref[:, sl] = (jnp.exp(logits - m) * inv).astype(norm_ref.dtype)


def decoder_nb_forward(z, library, params, *, tile_b=None, feature_chunk=None,
                       weight_dtype=jnp.bfloat16, out_dtype=jnp.bfloat16,
                       approx_reciprocal=None, single_buffer_weights=True):
    """DecoderNB forward pass with a single fused Pallas kernel.

    z:       (B, layer[0]) float32
    library: (B, 1)        float32 (log library size)
    params:  dict with
      'layers': list of dicts {w:(out,in), b:(out,), gamma, beta, mean, var: (out,)}
      'w_scale': (input_size, hidden), 'b_scale': (input_size,)
      'w_r':     (input_size, hidden), 'b_r':     (input_size,)
    """
    B, latent_dim = z.shape
    input_size, hidden = params["w_scale"].shape
    n_layers = len(params["layers"])
    if approx_reciprocal is None:
        approx_reciprocal = (np.dtype(weight_dtype) != np.dtype(np.float32))
    out_itemsize = np.dtype(out_dtype).itemsize

    # ---- feature chunking: chunk is a multiple of 128 and divides P_pad ----
    if feature_chunk is None:
        feature_chunk = min(_round_up(input_size, 128), 2048)
    chunk = _round_up(int(feature_chunk), 128)
    P_pad = _round_up(input_size, chunk)
    n_chunks = P_pad // chunk
    pad = P_pad - input_size

    # ---- fold BatchNorm (running stats) into each Linear; weights -> (in, out) ----
    flat_params = []
    for lp in params["layers"]:
        scale = lp["gamma"] * jax.lax.rsqrt(lp["var"] + BN_EPS)             # (out,)
        w_fold = (lp["w"] * scale[:, None]).T.astype(weight_dtype)          # (in, out)
        b_fold = ((lp["b"] - lp["mean"]) * scale + lp["beta"])[None, :].astype(jnp.float32)
        flat_params += [w_fold, b_fold]

    # ---- pad the feature axis; keep the two heads separate ----
    w_s = params["w_scale"].T                                               # (hidden, P)
    w_r = params["w_r"].T
    b_s = params["b_scale"]
    b_r = params["b_r"]
    if pad:
        w_s = jnp.pad(w_s, ((0, 0), (0, pad)))
        w_r = jnp.pad(w_r, ((0, 0), (0, pad)))
        b_s = jnp.pad(b_s, (0, pad), constant_values=-1e9)  # softmax pad cols -> exp == 0
        b_r = jnp.pad(b_r, (0, pad))
    flat_params += [w_s.astype(weight_dtype), b_s[None, :].astype(jnp.float32),
                    w_r.astype(weight_dtype), b_r[None, :].astype(jnp.float32)]

    # ---- VMEM-aware tile selection (clamped against the device capacity) ----
    weight_bytes = sum(int(a.size) * a.dtype.itemsize for a in flat_params)
    try:
        info = pltpu.get_tpu_info()
        vmem_cap = int(getattr(info, "vmem_capacity_bytes", 64 << 20))
    except Exception:
        vmem_cap = 64 << 20          # conservative (v7x-sized) if the query is unavailable
    budget = int(vmem_cap * 0.85)

    def footprint(tb_):
        # Conservative: double-buffered weights (fallback path), double-buffered z and
        # both outputs, plus in-kernel live intermediates (h, h_mxu, (tb, chunk) temps).
        w_b = 2 * weight_bytes
        in_b = 2 * tb_ * latent_dim * 4
        out_b = 2 * 2 * tb_ * P_pad * out_itemsize
        live = 2 * tb_ * hidden * 4 + 6 * tb_ * chunk * 4
        return w_b + in_b + out_b + live + (2 << 20)

    tb = tile_b if tile_b is not None else (512 if P_pad <= 2048 else 256)
    tb = min(_round_up(int(tb), 8), _round_up(B, 8))
    while tb > 8 and footprint(tb) > budget:
        tb = max(8, _round_up(tb // 2, 8))
    B_pad = _round_up(B, tb)
    z_p = jnp.pad(z, ((0, B_pad - B), (0, 0))) if B_pad != B else z

    vmem_limit = int(min(max(footprint(tb), 32 << 20), budget))

    kernel = functools.partial(_decoder_nb_kernel, n_layers, n_chunks, chunk,
                               bool(approx_reciprocal))
    grid = (B_pad // tb,)
    out_shape = (jax.ShapeDtypeStruct((B_pad, P_pad), out_dtype),
                 jax.ShapeDtypeStruct((B_pad, P_pad), out_dtype))
    out_specs = (pl.BlockSpec((tb, P_pad), lambda i: (i, 0)),
                 pl.BlockSpec((tb, P_pad), lambda i: (i, 0)))

    def _call(single_buffer):
        if single_buffer and hasattr(pl, "Buffered"):
            # Constant-index weights/biases: single-buffer to halve their VMEM residency.
            def const_spec(a):
                return pl.BlockSpec(a.shape, lambda i: (0, 0),
                                    pipeline_mode=pl.Buffered(buffer_count=1))
        else:
            def const_spec(a):
                return pl.BlockSpec(a.shape, lambda i: (0, 0))
        in_specs = [pl.BlockSpec((tb, latent_dim), lambda i: (i, 0))] + \
                   [const_spec(a) for a in flat_params]
        return pl.pallas_call(
            kernel,
            out_shape=out_shape,
            grid=grid,
            in_specs=in_specs,
            out_specs=out_specs,
            compiler_params=pltpu.CompilerParams(
                dimension_semantics=("parallel",),
                vmem_limit_bytes=vmem_limit),
        )(z_p, *flat_params)

    if single_buffer_weights:
        try:
            normalized_p, disper_p = _call(True)
        except Exception:
            # pipeline_mode=Buffered(1) not supported on this JAX build; use defaults.
            normalized_p, disper_p = _call(False)
    else:
        normalized_p, disper_p = _call(False)

    # Slice away batch / feature padding.
    normalized = normalized_p[:B, :input_size]
    disperation = disper_p[:B, :input_size]
    # imputation computed outside the kernel (cheap fused elementwise in XLA); this
    # removes a full (B, P) f32 store stream from the HBM-store-bound kernel.
    imputation = jnp.exp(library) * normalized.astype(jnp.float32)
    return dict(normalized=normalized, disperation=disperation, imputation=imputation)


# ------------------------- pure-JAX reference (for checking) -------------------------
def decoder_nb_reference(z, library, params):
    h = z
    for lp in params["layers"]:
        h = h @ lp["w"].T + lp["b"]
        h = (h - lp["mean"]) / jnp.sqrt(lp["var"] + BN_EPS) * lp["gamma"] + lp["beta"]
        h = jnp.maximum(h, 0.0)
    logits = h @ params["w_scale"].T + params["b_scale"]
    normalized = jax.nn.softmax(logits, axis=1)
    imputation = jnp.exp(library) * normalized
    disperation = jnp.exp(h @ params["w_r"].T + params["b_r"])
    return dict(normalized=normalized, disperation=disperation, imputation=imputation)


def init_params(key, layer, hidden, input_size):
    """Deterministic synthetic parameters (shapes match the PyTorch module)."""
    params = {"layers": []}
    for n_in, n_out in zip(layer[:-1], layer[1:]):
        key, k1, k2, k3, k4, k5, k6 = jax.random.split(key, 7)
        params["layers"].append(dict(
            w=jax.random.normal(k1, (n_out, n_in), jnp.float32) * 0.1,
            b=jax.random.normal(k2, (n_out,), jnp.float32) * 0.05,
            gamma=1.0 + 0.1 * jax.random.normal(k3, (n_out,), jnp.float32),
            beta=0.05 * jax.random.normal(k4, (n_out,), jnp.float32),
            mean=0.1 * jax.random.normal(k5, (n_out,), jnp.float32),
            var=jnp.abs(1.0 + 0.1 * jax.random.normal(k6, (n_out,), jnp.float32)),
        ))
    key, k1, k2, k3, k4 = jax.random.split(key, 5)
    params["w_scale"] = jax.random.normal(k1, (input_size, hidden), jnp.float32) * 0.1
    params["b_scale"] = jax.random.normal(k2, (input_size,), jnp.float32) * 0.05
    params["w_r"] = jax.random.normal(k3, (input_size, hidden), jnp.float32) * 0.1
    params["b_r"] = jax.random.normal(k4, (input_size,), jnp.float32) * 0.05
    return params


if __name__ == "__main__":
    # Small shapes implied by the module: layer=[latent, hidden], hidden, input_size.
    B = 8
    latent_dim = 16
    hidden = 32
    input_size = 100          # not a multiple of 128 -> exercises lane padding
    layer = [latent_dim, hidden]

    key = jax.random.PRNGKey(0)
    kz, klib, kp, kz2, klib2, kp2 = jax.random.split(key, 6)
    z = jax.random.normal(kz, (B, latent_dim), jnp.float32)
    library = jax.random.normal(klib, (B, 1), jnp.float32)  # log library size
    params = init_params(kp, layer, hidden, input_size)
    ref = decoder_nb_reference(z, library, params)

    # 1) exactness path: f32 weights + f32 outputs, exact reciprocal (single chunk).
    out = decoder_nb_forward(z, library, params,
                             weight_dtype=jnp.float32, out_dtype=jnp.float32)
    jax.block_until_ready(out)
    for k in ("normalized", "disperation", "imputation"):
        assert jnp.allclose(out[k], ref[k], atol=1e-4, rtol=1e-4), f"f32 {k}"

    # 2) performance path: bf16 weights + bf16 outputs, approx reciprocal.
    out = decoder_nb_forward(z, library, params)
    jax.block_until_ready(out)
    for k in ("normalized", "disperation", "imputation"):
        assert jnp.allclose(jnp.asarray(out[k], jnp.float32), ref[k],
                            atol=2e-2, rtol=2e-2), f"bf16 {k}"

    # 3) multi-chunk two-pass softmax path + ragged batch (batch padding) check.
    B2, input_size2 = 10, 300
    z2 = jax.random.normal(kz2, (B2, latent_dim), jnp.float32)
    lib2 = jax.random.normal(klib2, (B2, 1), jnp.float32)
    params2 = init_params(kp2, layer, hidden, input_size2)
    ref2 = decoder_nb_reference(z2, lib2, params2)
    out2 = decoder_nb_forward(z2, lib2, params2, weight_dtype=jnp.float32,
                              out_dtype=jnp.float32, feature_chunk=128, tile_b=8)
    jax.block_until_ready(out2)
    for k in ("normalized", "disperation", "imputation"):
        assert jnp.allclose(out2[k], ref2[k], atol=1e-4, rtol=1e-4), f"chunked {k}"

    print("KERNEL_OK")
</pallas_src>

<mosaic_0001>
module attributes {stable_mosaic.version = 11 : i64} {
  func.func @_decoder_nb_kernel(%arg0: i32, %arg1: memref<8x16xf32, #tpu.memory_space<vmem>>, %arg2: memref<16x32xf32, #tpu.memory_space<vmem>>, %arg3: memref<1x32xf32, #tpu.memory_space<vmem>>, %arg4: memref<32x128xf32, #tpu.memory_space<vmem>>, %arg5: memref<1x128xf32, #tpu.memory_space<vmem>>, %arg6: memref<32x128xf32, #tpu.memory_space<vmem>>, %arg7: memref<1x128xf32, #tpu.memory_space<vmem>>, %arg8: memref<8x128xf32, #tpu.memory_space<vmem>>, %arg9: memref<8x128xf32, #tpu.memory_space<vmem>>) attributes {dimension_semantics = [#tpu.dimension_semantics<parallel>], iteration_bounds = array<i64: 1>, scalar_prefetch = 0 : i64, scratch_operands = 0 : i64, tpu.core_type = #tpu.core_type<tc>, window_params = [{transform_indices = @transform_0, window_bounds = array<i64: 8, 16>}, {pipeline_mode = #tpu.pipeline_mode<synchronous>, transform_indices = @transform_1, window_bounds = array<i64: 16, 32>}, {pipeline_mode = #tpu.pipeline_mode<synchronous>, transform_indices = @transform_2, window_bounds = array<i64: 1, 32>}, {pipeline_mode = #tpu.pipeline_mode<synchronous>, transform_indices = @transform_3, window_bounds = array<i64: 32, 128>}, {pipeline_mode = #tpu.pipeline_mode<synchronous>, transform_indices = @transform_4, window_bounds = array<i64: 1, 128>}, {pipeline_mode = #tpu.pipeline_mode<synchronous>, transform_indices = @transform_5, window_bounds = array<i64: 32, 128>}, {pipeline_mode = #tpu.pipeline_mode<synchronous>, transform_indices = @transform_6, window_bounds = array<i64: 1, 128>}, {transform_indices = @transform_7, window_bounds = array<i64: 8, 128>}, {transform_indices = @transform_8, window_bounds = array<i64: 8, 128>}]} {
    %c0 = arith.constant 0 : index
    %c0_0 = arith.constant 0 : index
    %0 = vector.load %arg1[%c0, %c0_0] : memref<8x16xf32, #tpu.memory_space<vmem>>, vector<8x16xf32>
    %c0_1 = arith.constant 0 : index
    %c0_2 = arith.constant 0 : index
    %1 = vector.load %arg2[%c0_1, %c0_2] : memref<16x32xf32, #tpu.memory_space<vmem>>, vector<16x32xf32>
    %cst = arith.constant dense<0.000000e+00> : vector<8x32xf32>
    %2 = tpu.matmul %0, %1, %cst {dimension_numbers = #tpu.dot_dimension_numbers<[1], [0], [0], [1], [0, 0, 1, 1], [], []>} : vector<8x16xf32>, vector<16x32xf32>, vector<8x32xf32> -> vector<8x32xf32>
    %c0_3 = arith.constant 0 : index
    %c0_4 = arith.constant 0 : index
    %3 = vector.load %arg3[%c0_3, %c0_4] : memref<1x32xf32, #tpu.memory_space<vmem>>, vector<1x32xf32>
    %4 = vector.broadcast %3 : vector<1x32xf32> to vector<8x32xf32>
    %5 = arith.addf %2, %4 : vector<8x32xf32>
    %cst_5 = arith.constant 0.000000e+00 : f32
    %6 = vector.broadcast %cst_5 : f32 to vector<8x32xf32>
    %7 = arith.maximumf %5, %6 : vector<8x32xf32>
    %c0_6 = arith.constant 0 : index
    %c0_7 = arith.constant 0 : index
    %8 = vector.load %arg6[%c0_6, %c0_7] : memref<32x128xf32, #tpu.memory_space<vmem>>, vector<32x128xf32>
    %cst_8 = arith.constant dense<0.000000e+00> : vector<8x128xf32>
    %9 = tpu.matmul %7, %8, %cst_8 {dimension_numbers = #tpu.dot_dimension_numbers<[1], [0], [0], [1], [0, 0, 1, 1], [], []>} : vector<8x32xf32>, vector<32x128xf32>, vector<8x128xf32> -> vector<8x128xf32>
    %c0_9 = arith.constant 0 : index
    %c0_10 = arith.constant 0 : index
    %10 = vector.load %arg7[%c0_9, %c0_10] : memref<1x128xf32, #tpu.memory_space<vmem>>, vector<1x128xf32>
    %11 = vector.broadcast %10 : vector<1x128xf32> to vector<8x128xf32>
    %12 = arith.addf %9, %11 : vector<8x128xf32>
    %13 = math.exp %12 : vector<8x128xf32>
    %c0_11 = arith.constant 0 : index
    %c0_12 = arith.constant 0 : index
    %14 = vector.load %arg9[%c0_11, %c0_12] : memref<8x128xf32, #tpu.memory_space<vmem>>, vector<8x128xf32>
    tpu.vector_store %arg9[%c0_11, %c0_12], %13 {strides = array<i32>} : memref<8x128xf32, #tpu.memory_space<vmem>>, vector<8x128xf32>,
    %cst_13 = arith.constant 0xFF800000 : f32
    %15 = vector.broadcast %cst_13 : f32 to vector<8x1xf32>
    %cst_14 = arith.constant 0.000000e+00 : f32
    %16 = vector.broadcast %cst_14 : f32 to vector<8x1xf32>
    %c0_15 = arith.constant 0 : index
    %c0_16 = arith.constant 0 : index
    %17 = vector.load %arg4[%c0_15, %c0_16] : memref<32x128xf32, #tpu.memory_space<vmem>>, vector<32x128xf32>
    %cst_17 = arith.constant dense<0.000000e+00> : vector<8x128xf32>
    %18 = tpu.matmul %7, %17, %cst_17 {dimension_numbers = #tpu.dot_dimension_numbers<[1], [0], [0], [1], [0, 0, 1, 1], [], []>} : vector<8x32xf32>, vector<32x128xf32>, vector<8x128xf32> -> vector<8x128xf32>
    %c0_18 = arith.constant 0 : index
    %c0_19 = arith.constant 0 : index
    %19 = vector.load %arg5[%c0_18, %c0_19] : memref<1x128xf32, #tpu.memory_space<vmem>>, vector<1x128xf32>
    %20 = vector.broadcast %19 : vector<1x128xf32> to vector<8x128xf32>
    %21 = arith.addf %18, %20 : vector<8x128xf32>
    %cst_20 = arith.constant dense<0xFF800000> : vector<8xf32>
    %22 = vector.multi_reduction <maximumf>, %21, %cst_20 [1] : vector<8x128xf32> to vector<8xf32>
    %23 = vector.shape_cast %22 : vector<8xf32> to vector<8x1xf32>
    %24 = arith.maximumf %15, %23 : vector<8x1xf32>
    %25 = arith.subf %15, %24 : vector<8x1xf32>
    %26 = math.exp %25 : vector<8x1xf32>
    %27 = arith.mulf %16, %26 : vector<8x1xf32>
    %28 = vector.broadcast %24 : vector<8x1xf32> to vector<8x128xf32>
    %29 = arith.subf %21, %28 : vector<8x128xf32>
    %30 = math.exp %29 : vector<8x128xf32>
    %cst_21 = arith.constant dense<0.000000e+00> : vector<8xf32>
    %31 = vector.multi_reduction <add>, %30, %cst_21 [1] : vector<8x128xf32> to vector<8xf32>
    %32 = vector.shape_cast %31 : vector<8xf32> to vector<8x1xf32>
    %33 = arith.addf %27, %32 : vector<8x1xf32>
    %cst_22 = arith.constant 1.000000e+00 : f32
    %34 = vector.broadcast %cst_22 : f32 to vector<8x1xf32>
    %35 = arith.divf %34, %33 : vector<8x1xf32>
    %c0_23 = arith.constant 0 : index
    %c0_24 = arith.constant 0 : index
    %36 = vector.load %arg4[%c0_23, %c0_24] : memref<32x128xf32, #tpu.memory_space<vmem>>, vector<32x128xf32>
    %cst_25 = arith.constant dense<0.000000e+00> : vector<8x128xf32>
    %37 = tpu.matmul %7, %36, %cst_25 {dimension_numbers = #tpu.dot_dimension_numbers<[1], [0], [0], [1], [0, 0, 1, 1], [], []>} : vector<8x32xf32>, vector<32x128xf32>, vector<8x128xf32> -> vector<8x128xf32>
    %c0_26 = arith.constant 0 : index
    %c0_27 = arith.constant 0 : index
    %38 = vector.load %arg5[%c0_26, %c0_27] : memref<1x128xf32, #tpu.memory_space<vmem>>, vector<1x128xf32>
    %39 = vector.broadcast %38 : vector<1x128xf32> to vector<8x128xf32>
    %40 = arith.addf %37, %39 : vector<8x128xf32>
    %41 = vector.broadcast %24 : vector<8x1xf32> to vector<8x128xf32>
    %42 = arith.subf %40, %41 : vector<8x128xf32>
    %43 = math.exp %42 : vector<8x128xf32>
    %44 = vector.broadcast %35 : vector<8x1xf32> to vector<8x128xf32>
    %45 = arith.mulf %43, %44 : vector<8x128xf32>
    %c0_28 = arith.constant 0 : index
    %c0_29 = arith.constant 0 : index
    %46 = vector.load %arg8[%c0_28, %c0_29] : memref<8x128xf32, #tpu.memory_space<vmem>>, vector<8x128xf32>
    tpu.vector_store %arg8[%c0_28, %c0_29], %45 {strides = array<i32>} : memref<8x128xf32, #tpu.memory_space<vmem>>, vector<8x128xf32>,
    return
  }
  func.func @transform_0(%arg0: i32) -> (i32, i32) {
    %c0_i32 = arith.constant 0 : i32
    %c0_i32_0 = arith.constant 0 : i32
    return %arg0, %c0_i32 : i32, i32
  }
  func.func @transform_1(%arg0: i32) -> (i32, i32) {
    %c0_i32 = arith.constant 0 : i32
    %c0_i32_0 = arith.constant 0 : i32
    %c0_i32_1 = arith.constant 0 : i32
    return %c0_i32, %c0_i32_0 : i32, i32
  }
  func.func @transform_2(%arg0: i32) -> (i32, i32) {
    %c0_i32 = arith.constant 0 : i32
    %c0_i32_0 = arith.constant 0 : i32
    %c0_i32_1 = arith.constant 0 : i32
    return %c0_i32, %c0_i32_0 : i32, i32
  }
  func.func @transform_3(%arg0: i32) -> (i32, i32) {
    %c0_i32 = arith.constant 0 : i32
    %c0_i32_0 = arith.constant 0 : i32
    %c0_i32_1 = arith.constant 0 : i32
    return %c0_i32, %c0_i32_0 : i32, i32
  }
  func.func @transform_4(%arg0: i32) -> (i32, i32) {
    %c0_i32 = arith.constant 0 : i32
    %c0_i32_0 = arith.constant 0 : i32
    %c0_i32_1 = arith.constant 0 : i32
    return %c0_i32, %c0_i32_0 : i32, i32
  }
  func.func @transform_5(%arg0: i32) -> (i32, i32) {
    %c0_i32 = arith.constant 0 : i32
    %c0_i32_0 = arith.constant 0 : i32
    %c0_i32_1 = arith.constant 0 : i32
    return %c0_i32, %c0_i32_0 : i32, i32
  }
  func.func @transform_6(%arg0: i32) -> (i32, i32) {
    %c0_i32 = arith.constant 0 : i32
    %c0_i32_0 = arith.constant 0 : i32
    %c0_i32_1 = arith.constant 0 : i32
    return %c0_i32, %c0_i32_0 : i32, i32
  }
  func.func @transform_7(%arg0: i32) -> (i32, i32) {
    %c0_i32 = arith.constant 0 : i32
    %c0_i32_0 = arith.constant 0 : i32
    return %arg0, %c0_i32 : i32, i32
  }
  func.func @transform_8(%arg0: i32) -> (i32, i32) {
    %c0_i32 = arith.constant 0 : i32
    %c0_i32_0 = arith.constant 0 : i32
    return %arg0, %c0_i32 : i32, i32
  }
}

module attributes {stable_mosaic.version = 11 : i64} {
  func.func @_decoder_nb_kernel(%arg0: i32, %arg1: memref<8x16xf32, #tpu.memory_space<vmem>>, %arg2: memref<16x32xf32, #tpu.memory_space<vmem>>, %arg3: memref<1x32xf32, #tpu.memory_space<vmem>>, %arg4: memref<32x128xf32, #tpu.memory_space<vmem>>, %arg5: memref<1x128xf32, #tpu.memory_space<vmem>>, %arg6: memref<32x128xf32, #tpu.memory_space<vmem>>, %arg7: memref<1x128xf32, #tpu.memory_space<vmem>>, %arg8: memref<8x128xf32, #tpu.memory_space<vmem>>, %arg9: memref<8x128xf32, #tpu.memory_space<vmem>>) attributes {dimension_semantics = [#tpu.dimension_semantics<parallel>], iteration_bounds = array<i64: 1>, scalar_prefetch = 0 : i64, scratch_operands = 0 : i64, tpu.core_type = #tpu.core_type<tc>, window_params = [{transform_indices = @transform_0, window_bounds = array<i64: 8, 16>}, {pipeline_mode = #tpu.pipeline_mode<synchronous>, transform_indices = @transform_1, window_bounds = array<i64: 16, 32>}, {pipeline_mode = #tpu.pipeline_mode<synchronous>, transform_indices = @transform_2, window_bounds = array<i64: 1, 32>}, {pipeline_mode = #tpu.pipeline_mode<synchronous>, transform_indices = @transform_3, window_bounds = array<i64: 32, 128>}, {pipeline_mode = #tpu.pipeline_mode<synchronous>, transform_indices = @transform_4, window_bounds = array<i64: 1, 128>}, {pipeline_mode = #tpu.pipeline_mode<synchronous>, transform_indices = @transform_5, window_bounds = array<i64: 32, 128>}, {pipeline_mode = #tpu.pipeline_mode<synchronous>, transform_indices = @transform_6, window_bounds = array<i64: 1, 128>}, {transform_indices = @transform_7, window_bounds = array<i64: 8, 128>}, {transform_indices = @transform_8, window_bounds = array<i64: 8, 128>}]} {
    %c0 = arith.constant 0 : index
    %c0_0 = arith.constant 0 : index
    %0 = vector.load %arg1[%c0, %c0_0] : memref<8x16xf32, #tpu.memory_space<vmem>>, vector<8x16xf32>
    %c0_1 = arith.constant 0 : index
    %c0_2 = arith.constant 0 : index
    %1 = vector.load %arg2[%c0_1, %c0_2] : memref<16x32xf32, #tpu.memory_space<vmem>>, vector<16x32xf32>
    %cst = arith.constant dense<0.000000e+00> : vector<8x32xf32>
    %2 = tpu.matmul %0, %1, %cst {dimension_numbers = #tpu.dot_dimension_numbers<[1], [0], [0], [1], [0, 0, 1, 1], [], []>} : vector<8x16xf32>, vector<16x32xf32>, vector<8x32xf32> -> vector<8x32xf32>
    %c0_3 = arith.constant 0 : index
    %c0_4 = arith.constant 0 : index
    %3 = vector.load %arg3[%c0_3, %c0_4] : memref<1x32xf32, #tpu.memory_space<vmem>>, vector<1x32xf32>
    %4 = vector.broadcast %3 : vector<1x32xf32> to vector<8x32xf32>
    %5 = arith.addf %2, %4 : vector<8x32xf32>
    %cst_5 = arith.constant 0.000000e+00 : f32
    %6 = vector.broadcast %cst_5 : f32 to vector<8x32xf32>
    %7 = arith.maximumf %5, %6 : vector<8x32xf32>
    %c0_6 = arith.constant 0 : index
    %c0_7 = arith.constant 0 : index
    %8 = vector.load %arg6[%c0_6, %c0_7] : memref<32x128xf32, #tpu.memory_space<vmem>>, vector<32x128xf32>
    %cst_8 = arith.constant dense<0.000000e+00> : vector<8x128xf32>
    %9 = tpu.matmul %7, %8, %cst_8 {dimension_numbers = #tpu.dot_dimension_numbers<[1], [0], [0], [1], [0, 0, 1, 1], [], []>} : vector<8x32xf32>, vector<32x128xf32>, vector<8x128xf32> -> vector<8x128xf32>
    %c0_9 = arith.constant 0 : index
    %c0_10 = arith.constant 0 : index
    %10 = vector.load %arg7[%c0_9, %c0_10] : memref<1x128xf32, #tpu.memory_space<vmem>>, vector<1x128xf32>
    %11 = vector.broadcast %10 : vector<1x128xf32> to vector<8x128xf32>
    %12 = arith.addf %9, %11 : vector<8x128xf32>
    %13 = math.exp %12 : vector<8x128xf32>
    %c0_11 = arith.constant 0 : index
    %c0_12 = arith.constant 0 : index
    %14 = vector.load %arg9[%c0_11, %c0_12] : memref<8x128xf32, #tpu.memory_space<vmem>>, vector<8x128xf32>
    tpu.vector_store %arg9[%c0_11, %c0_12], %13 {strides = array<i32>} : memref<8x128xf32, #tpu.memory_space<vmem>>, vector<8x128xf32>,
    %cst_13 = arith.constant 0xFF800000 : f32
    %15 = vector.broadcast %cst_13 : f32 to vector<8x1xf32>
    %cst_14 = arith.constant 0.000000e+00 : f32
    %16 = vector.broadcast %cst_14 : f32 to vector<8x1xf32>
    %c0_15 = arith.constant 0 : index
    %c0_16 = arith.constant 0 : index
    %17 = vector.load %arg4[%c0_15, %c0_16] : memref<32x128xf32, #tpu.memory_space<vmem>>, vector<32x128xf32>
    %cst_17 = arith.constant dense<0.000000e+00> : vector<8x128xf32>
    %18 = tpu.matmul %7, %17, %cst_17 {dimension_numbers = #tpu.dot_dimension_numbers<[1], [0], [0], [1], [0, 0, 1, 1], [], []>} : vector<8x32xf32>, vector<32x128xf32>, vector<8x128xf32> -> vector<8x128xf32>
    %c0_18 = arith.constant 0 : index
    %c0_19 = arith.constant 0 : index
    %19 = vector.load %arg5[%c0_18, %c0_19] : memref<1x128xf32, #tpu.memory_space<vmem>>, vector<1x128xf32>
    %20 = vector.broadcast %19 : vector<1x128xf32> to vector<8x128xf32>
    %21 = arith.addf %18, %20 : vector<8x128xf32>
    %cst_20 = arith.constant dense<0xFF800000> : vector<8xf32>
    %22 = vector.multi_reduction <maximumf>, %21, %cst_20 [1] : vector<8x128xf32> to vector<8xf32>
    %23 = vector.shape_cast %22 : vector<8xf32> to vector<8x1xf32>
    %24 = arith.maximumf %15, %23 : vector<8x1xf32>
    %25 = arith.subf %15, %24 : vector<8x1xf32>
    %26 = math.exp %25 : vector<8x1xf32>
    %27 = arith.mulf %16, %26 : vector<8x1xf32>
    %28 = vector.broadcast %24 : vector<8x1xf32> to vector<8x128xf32>
    %29 = arith.subf %21, %28 : vector<8x128xf32>
    %30 = math.exp %29 : vector<8x128xf32>
    %cst_21 = arith.constant dense<0.000000e+00> : vector<8xf32>
    %31 = vector.multi_reduction <add>, %30, %cst_21 [1] : vector<8x128xf32> to vector<8xf32>
    %32 = vector.shape_cast %31 : vector<8xf32> to vector<8x1xf32>
    %33 = arith.addf %27, %32 : vector<8x1xf32>
    %cst_22 = arith.constant 1.000000e+00 : f32
    %34 = vector.broadcast %cst_22 : f32 to vector<8x1xf32>
    %35 = arith.divf %34, %33 : vector<8x1xf32>
    %c0_23 = arith.constant 0 : index
    %c0_24 = arith.constant 0 : index
    %36 = vector.load %arg4[%c0_23, %c0_24] : memref<32x128xf32, #tpu.memory_space<vmem>>, vector<32x128xf32>
    %cst_25 = arith.constant dense<0.000000e+00> : vector<8x128xf32>
    %37 = tpu.matmul %7, %36, %cst_25 {dimension_numbers = #tpu.dot_dimension_numbers<[1], [0], [0], [1], [0, 0, 1, 1], [], []>} : vector<8x32xf32>, vector<32x128xf32>, vector<8x128xf32> -> vector<8x128xf32>
    %c0_26 = arith.constant 0 : index
    %c0_27 = arith.constant 0 : index
    %38 = vector.load %arg5[%c0_26, %c0_27] : memref<1x128xf32, #tpu.memory_space<vmem>>, vector<1x128xf32>
    %39 = vector.broadcast %38 : vector<1x128xf32> to vector<8x128xf32>
    %40 = arith.addf %37, %39 : vector<8x128xf32>
    %41 = vector.broadcast %24 : vector<8x1xf32> to vector<8x128xf32>
    %42 = arith.subf %40, %41 : vector<8x128xf32>
    %43 = math.exp %42 : vector<8x128xf32>
    %44 = vector.broadcast %35 : vector<8x1xf32> to vector<8x128xf32>
    %45 = arith.mulf %43, %44 : vector<8x128xf32>
    %c0_28 = arith.constant 0 : index
    %c0_29 = arith.constant 0 : index
    %46 = vector.load %arg8[%c0_28, %c0_29] : memref<8x128xf32, #tpu.memory_space<vmem>>, vector<8x128xf32>
    tpu.vector_store %arg8[%c0_28, %c0_29], %45 {strides = array<i32>} : memref<8x128xf32, #tpu.memory_space<vmem>>, vector<8x128xf32>,
    return
  }
  func.func @transform_0(%arg0: i32) -> (i32, i32) {
    %c0_i32 = arith.constant 0 : i32
    %c0_i32_0 = arith.constant 0 : i32
    return %arg0, %c0_i32 : i32, i32
  }
  func.func @transform_1(%arg0: i32) -> (i32, i32) {
    %c0_i32 = arith.constant 0 : i32
    %c0_i32_0 = arith.constant 0 : i32
    %c0_i32_1 = arith.constant 0 : i32
    return %c0_i32, %c0_i32_0 : i32, i32
  }
  func.func @transform_2(%arg0: i32) -> (i32, i32) {
    %c0_i32 = arith.constant 0 : i32
    %c0_i32_0 = arith.constant 0 : i32
    %c0_i32_1 = arith.constant 0 : i32
    return %c0_i32, %c0_i32_0 : i32, i32
  }
  func.func @transform_3(%arg0: i32) -> (i32, i32) {
    %c0_i32 = arith.constant 0 : i32
    %c0_i32_0 = arith.constant 0 : i32
    %c0_i32_1 = arith.constant 0 : i32
    return %c0_i32, %c0_i32_0 : i32, i32
  }
  func.func @transform_4(%arg0: i32) -> (i32, i32) {
    %c0_i32 = arith.constant 0 : i32
    %c0_i32_0 = arith.constant 0 : i32
    %c0_i32_1 = arith.constant 0 : i32
    return %c0_i32, %c0_i32_0 : i32, i32
  }
  func.func @transform_5(%arg0: i32) -> (i32, i32) {
    %c0_i32 = arith.constant 0 : i32
    %c0_i32_0 = arith.constant 0 : i32
    %c0_i32_1 = arith.constant 0 : i32
    return %c0_i32, %c0_i32_0 : i32, i32
  }
  func.func @transform_6(%arg0: i32) -> (i32, i32) {
    %c0_i32 = arith.constant 0 : i32
    %c0_i32_0 = arith.constant 0 : i32
    %c0_i32_1 = arith.constant 0 : i32
    return %c0_i32, %c0_i32_0 : i32, i32
  }
  func.func @transform_7(%arg0: i32) -> (i32, i32) {
    %c0_i32 = arith.constant 0 : i32
    %c0_i32_0 = arith.constant 0 : i32
    return %arg0, %c0_i32 : i32, i32
  }
  func.func @transform_8(%arg0: i32) -> (i32, i32) {
    %c0_i32 = arith.constant 0 : i32
    %c0_i32_0 = arith.constant 0 : i32
    return %arg0, %c0_i32 : i32, i32
  }
}

</mosaic_0001>

<llo_original>
// kernel: tpu_custom_call.1
$region0: #{tpu_custom_call.1}
  #allocation0 [shape = 'u32[]', space=smem, size = 0x4, offset = 0x4, fixed_abs, tag = 'smem constant byte address 0x4 - core index']
  #allocation1 [shape = 'u32[144,128]{1,0:T(1,128)}', space=vmem, size = 0x12000, scoped, tag = 'internal scratch']
  %s0 = inlined_call_operand.hbm [shape: f32[8,16], index: 0, kind: input, shape index: {}]
  %s1 = inlined_call_operand.hbm [shape: f32[16,32], index: 1, kind: input, shape index: {}]
  %s2 = inlined_call_operand.vmem [shape: f32[1,32], index: 2, kind: input, shape index: {}]
  %s3 = inlined_call_operand.hbm [shape: f32[32,128], index: 3, kind: input, shape index: {}]
  %s4 = inlined_call_operand.vmem [shape: f32[1,128], index: 4, kind: input, shape index: {}]
  %s5 = inlined_call_operand.hbm [shape: f32[32,128], index: 5, kind: input, shape index: {}]
  %s6 = inlined_call_operand.vmem [shape: f32[1,128], index: 6, kind: input, shape index: {}]
  %s7 = inlined_call_operand.hbm [shape: f32[8,128], index: 7, kind: output, shape index: {0}]
  %s8 = inlined_call_operand.hbm [shape: f32[8,128], index: 8, kind: output, shape index: {1}]
  %9 = xla_tuple %s7, %s8
  %s10 = sld [smem:[#allocation0]]
  $region62: #{tpu_custom_call.1} parent=0
    _
  %s12 = ssub.s32 1, %s10
  %s13 = scalar_select 0, %s12, %s10
  $region1: #{tpu_custom_call.1} parent=0
    #allocation2 [shape = 'u8[4096]{0}', space=vmem, size = 0x1000, scoped, tag = 'input window, operand 0, single buffered']
    #allocation3 [shape = 's32[1]{0}', space=sflag, size = 0x4, scoped, tag = 'scoped memory for tpu_custom_call.1']
    #allocation4 [shape = 's32[1]{0}', space=sflag, size = 0x4, scoped, tag = 'scoped memory for tpu_custom_call.1']
    #allocation5 [shape = 'u8[8192]{0}', space=vmem, size = 0x2000, scoped, tag = 'input window, operand 1, single buffered']
    #allocation6 [shape = 's32[1]{0}', space=sflag, size = 0x4, scoped, tag = 'scoped memory for tpu_custom_call.1']
    #allocation7 [shape = 'u8[16384]{0}', space=vmem, size = 0x4000, scoped, tag = 'input window, operand 3, single buffered']
    #allocation8 [shape = 'u8[16384]{0}', space=vmem, size = 0x4000, scoped, tag = 'input window, operand 5, single buffered']
    #allocation9 [shape = 's32[1]{0}', space=sflag, size = 0x4, scoped, tag = 'scoped memory for tpu_custom_call.1']
    #allocation10 [shape = 'u8[4096]{0}', space=vmem, size = 0x1000, scoped, tag = 'output window, operand 0, single buffered']
    #allocation11 [shape = 'u8[4096]{0}', space=vmem, size = 0x1000, scoped, tag = 'output window, operand 1, single buffered']
    #allocation12 [shape = 's32[1]{0}', space=sflag, size = 0x4, scoped, tag = 'scoped memory for tpu_custom_call.1']
    %14 = vsyncpa [#allocation3], 0
    %15 = vsyncpa [#allocation6], 0
    %16 = vsyncpa [#allocation9], 0
    %17 = vsyncpa [#allocation4], 0
    %18 = vsyncpa [#allocation12], 0
    // Predicated region
    $region2: #{tpu_custom_call.1} parent=1 // pred_check
      _
    $region3: #{tpu_custom_call.1} parent=1 // pred_check_branch
      %20 = sbr.rel (0) target = $region5
    $region4: #{tpu_custom_call.1} parent=1 // pred_region
      %s22 = ssub.s32 128, 128
      %23 = vsyncadd [#allocation3], %s22
      %s25 = sshll.u32 [#allocation2], 4
      %s26 = int_to_ptr.vmem [resolvable:$true] %s25
      %28 = dma.hbm_to_vmem [thread:$0]  %s0, 128, %s26, [#allocation3]
    $region5: #{tpu_custom_call.1} parent=1 // pred_fallthru
      _
    // Predicated region
    $region6: #{tpu_custom_call.1} parent=1 // pred_check
      _
    $region7: #{tpu_custom_call.1} parent=1 // pred_check_branch
      %30 = sbr.rel (0) target = $region9
    $region8: #{tpu_custom_call.1} parent=1 // pred_region
      %s32 = ssub.s32 256, 256
      %33 = vsyncadd [#allocation6], %s32
      %s34 = sshll.u32 [#allocation5], 4
      %s35 = int_to_ptr.vmem [resolvable:$true] %s34
      %40 = dma.hbm_to_vmem [thread:$0]  %s1, 256, %s35, [#allocation6], 128, 128, 8
    $region9: #{tpu_custom_call.1} parent=1 // pred_fallthru
      _
    // Predicated region
    $region10: #{tpu_custom_call.1} parent=1 // pred_check
      _
    $region11: #{tpu_custom_call.1} parent=1 // pred_check_branch
      %42 = sbr.rel (0) target = $region13
    $region12: #{tpu_custom_call.1} parent=1 // pred_region
      _
    $region13: #{tpu_custom_call.1} parent=1 // pred_fallthru
      _
    // Predicated region
    $region14: #{tpu_custom_call.1} parent=1 // pred_check
      _
    $region15: #{tpu_custom_call.1} parent=1 // pred_check_branch
      %44 = sbr.rel (0) target = $region17
    $region16: #{tpu_custom_call.1} parent=1 // pred_region
      %s46 = ssub.s32 512, 512
      %47 = vsyncadd [#allocation6], %s46
      %s48 = sshll.u32 [#allocation7], 4
      %s49 = int_to_ptr.vmem [resolvable:$true] %s48
      %54 = dma.hbm_to_vmem [thread:$0]  %s3, 512, %s49, [#allocation6], 128, 128, 8
    $region17: #{tpu_custom_call.1} parent=1 // pred_fallthru
      _
    // Predicated region
    $region18: #{tpu_custom_call.1} parent=1 // pred_check
      _
    $region19: #{tpu_custom_call.1} parent=1 // pred_check_branch
      %56 = sbr.rel (0) target = $region21
    $region20: #{tpu_custom_call.1} parent=1 // pred_region
      _
    $region21: #{tpu_custom_call.1} parent=1 // pred_fallthru
      _
    // Predicated region
    $region22: #{tpu_custom_call.1} parent=1 // pred_check
      _
    $region23: #{tpu_custom_call.1} parent=1 // pred_check_branch
      %58 = sbr.rel (0) target = $region25
    $region24: #{tpu_custom_call.1} parent=1 // pred_region
      %s60 = ssub.s32 512, 512
      %61 = vsyncadd [#allocation9], %s60
      %s62 = sshll.u32 [#allocation8], 4
      %s63 = int_to_ptr.vmem [resolvable:$true] %s62
      %68 = dma.hbm_to_vmem [thread:$0]  %s5, 512, %s63, [#allocation9], 128, 128, 8
    $region25: #{tpu_custom_call.1} parent=1 // pred_fallthru
      _
    // Predicated region
    $region26: #{tpu_custom_call.1} parent=1 // pred_check
      _
    $region27: #{tpu_custom_call.1} parent=1 // pred_check_branch
      %70 = sbr.rel (0) target = $region29
    $region28: #{tpu_custom_call.1} parent=1 // pred_region
      _
    $region29: #{tpu_custom_call.1} parent=1 // pred_fallthru
      _
    // Predicated region
    $region30: #{tpu_custom_call.1} parent=1 // pred_check
      _
    $region31: #{tpu_custom_call.1} parent=1 // pred_check_branch
      %72 = sbr.rel (0) target = $region33
    $region32: #{tpu_custom_call.1} parent=1 // pred_region
      %73 = dma.done [#allocation3], 128
    $region33: #{tpu_custom_call.1} parent=1 // pred_fallthru
      _
    // Predicated region
    $region34: #{tpu_custom_call.1} parent=1 // pred_check
      _
    $region35: #{tpu_custom_call.1} parent=1 // pred_check_branch
      %75 = sbr.rel (0) target = $region37
    $region36: #{tpu_custom_call.1} parent=1 // pred_region
      %76 = dma.done [#allocation6], 256
    $region37: #{tpu_custom_call.1} parent=1 // pred_fallthru
      _
    // Predicated region
    $region38: #{tpu_custom_call.1} parent=1 // pred_check
      _
    $region39: #{tpu_custom_call.1} parent=1 // pred_check_branch
      %78 = sbr.rel (0) target = $region41
    $region40: #{tpu_custom_call.1} parent=1 // pred_region
      %79 = dma.done [#allocation6], 512
    $region41: #{tpu_custom_call.1} parent=1 // pred_fallthru
      _
    // Predicated region
    $region42: #{tpu_custom_call.1} parent=1 // pred_check
      _
    $region43: #{tpu_custom_call.1} parent=1 // pred_check_branch
      %81 = sbr.rel (0) target = $region45
    $region44: #{tpu_custom_call.1} parent=1 // pred_region
      %82 = dma.done [#allocation9], 512
    $region45: #{tpu_custom_call.1} parent=1 // pred_fallthru
      _
    %v83 = vld [vmem:[#allocation2] sm:$0xff]
    %v84 = vld [vmem:[#allocation5] sm:$0xff]
    %v85 = vld [vmem:[#allocation5 + $0x8] sm:$0xff]
    %v86 = vld [vmem:[%s2] sm:$0x1]
    %v88 = vlaneseq
    %v89 = vshrl.u32 %v88, 7
    %v90 = vsub.s32 0, %v89
    %v91 = vrot.slane %v86, %v90
    %vm93 = vcmask 130048
    %v95 = vsel %vm93, %v83, 0
    %97 = vmatprep.subr.mxu0 0.0
    %98 = vmatpush1.msra.mxu0 %v84
    %99 = vmatprep.subr.mxu0 0.0
    %100 = vmatpush1.msra.mxu0 %v85
    %101 = vmatprep.subr.mxu0 0.0
    %102 = vmatpush1.msra.mxu0 0.0
    %103 = vmatprep.subr.mxu0 0.0
    %104 = vmatpush1.msra.mxu0 0.0
    %105 = vmatprep.subr.mxu0 0.0
    %106 = vmatpush1.msra.mxu0 0.0
    %107 = vmatprep.subr.mxu0 0.0
    %108 = vmatpush1.msra.mxu0 0.0
    %109 = vmatprep.subr.mxu0 0.0
    %110 = vmatpush1.msra.mxu0 0.0
    %111 = vmatprep.subr.mxu0 0.0
    %112 = vmatpush1.msra.mxu0 0.0
    %113 = vmatprep.subr.mxu0 0.0
    %114 = vmatpush1.msra.mxu0 0.0
    %115 = vmatprep.subr.mxu0 0.0
    %116 = vmatpush1.msra.mxu0 0.0
    %117 = vmatprep.subr.mxu0 0.0
    %118 = vmatpush1.msra.mxu0 0.0
    %119 = vmatprep.subr.mxu0 0.0
    %120 = vmatpush1.msra.mxu0 0.0
    %121 = vmatprep.subr.mxu0 0.0
    %122 = vmatpush1.msra.mxu0 0.0
    %123 = vmatprep.subr.mxu0 0.0
    %124 = vmatpush1.msra.mxu0 0.0
    %125 = vmatprep.subr.mxu0 0.0
    %126 = vmatpush1.msra.mxu0 0.0
    %127 = vmatprep.subr.mxu0 0.0
    %128 = vmatpush1.msra.mxu0 0.0
    %129 = vmatprep.subr.mxu0 0.0
    %130 = vmatpush1.msra.mxu0 0.0
    %131 = vmatprep.subr.mxu0 0.0
    %132 = vmatpush1.msra.mxu0 0.0
    %133 = vmatprep.subr.mxu0 0.0
    %134 = vmatpush1.msra.mxu0 0.0
    %135 = vmatprep.subr.mxu0 0.0
    %136 = vmatpush1.msra.mxu0 0.0
    %137 = vmatprep.subr.mxu0 0.0
    %138 = vmatpush1.msra.mxu0 0.0
    %139 = vmatprep.subr.mxu0 0.0
    %140 = vmatpush1.msra.mxu0 0.0
    %141 = vmatprep.subr.mxu0 0.0
    %142 = vmatpush1.msra.mxu0 0.0
    %143 = vmatprep.subr.mxu0 0.0
    %144 = vmatpush1.msra.mxu0 0.0
    %145 = vmatprep.subr.mxu0 0.0
    %146 = vmatpush1.msra.mxu0 0.0
    %147 = vmatprep.subr.mxu0 0.0
    %148 = vmatpush1.msra.mxu0 0.0
    %149 = vmatprep.subr.mxu0 0.0
    %150 = vmatpush1.msra.mxu0 0.0
    %151 = vmatprep.subr.mxu0 0.0
    %152 = vmatpush1.msra.mxu0 0.0
    %153 = vmatprep.subr.mxu0 0.0
    %154 = vmatpush1.msra.mxu0 0.0
    %155 = vmatprep.subr.mxu0 0.0
    %156 = vmatpush1.msra.mxu0 0.0
    %157 = vmatprep.subr.mxu0 0.0
    %158 = vmatpush1.msra.mxu0 0.0
    %159 = vmatprep.subr.mxu0 0.0
    %160 = vmatpush1.msra.mxu0 0.0
    %161 = vmatprep.mubr.f32.mxu0 0.0
    %162 = vmatmul.mubr.f32.gmra.mrb[0].mxu0 %v95
    %v163 = vpop.f32.mrb[0].mxu0
    %v164 = vadd.f32 %v91, %v163
    %v165 = vpop.f32.mrb[0].mxu0
    %166 = vdwg.mxu0
    %v167 = vmax.f32 %v164, 0.0
    %v168 = vld [vmem:[#allocation8] sm:$0xff]
    %v169 = vld [vmem:[#allocation8 + $0x8] sm:$0xff]
    %v170 = vld [vmem:[#allocation8 + $0x10] sm:$0xff]
    %v171 = vld [vmem:[#allocation8 + $0x18] sm:$0xff]
    %v172 = vld [vmem:[%s6] sm:$0x1]
    %v174 = vlaneseq
    %v175 = vshrl.u32 %v174, 7
    %v176 = vsub.s32 0, %v175
    %v177 = vrot.slane %v172, %v176
    %vm179 = vcmask 261120
    %v181 = vsel %vm179, %v167, 0
    %183 = vmatprep.subr.mxu0 0.0
    %184 = vmatpush1.msra.mxu0 %v168
    %185 = vmatprep.subr.mxu0 0.0
    %186 = vmatpush1.msra.mxu0 %v169
    %187 = vmatprep.subr.mxu0 0.0
    %188 = vmatpush1.msra.mxu0 %v170
    %189 = vmatprep.subr.mxu0 0.0
    %190 = vmatpush1.msra.mxu0 %v171
    %191 = vmatprep.subr.mxu0 0.0
    %192 = vmatpush1.msra.mxu0 0.0
    %193 = vmatprep.subr.mxu0 0.0
    %194 = vmatpush1.msra.mxu0 0.0
    %195 = vmatprep.subr.mxu0 0.0
    %196 = vmatpush1.msra.mxu0 0.0
    %197 = vmatprep.subr.mxu0 0.0
    %198 = vmatpush1.msra.mxu0 0.0
    %199 = vmatprep.subr.mxu0 0.0
    %200 = vmatpush1.msra.mxu0 0.0
    %201 = vmatprep.subr.mxu0 0.0
    %202 = vmatpush1.msra.mxu0 0.0
    %203 = vmatprep.subr.mxu0 0.0
    %204 = vmatpush1.msra.mxu0 0.0
    %205 = vmatprep.subr.mxu0 0.0
    %206 = vmatpush1.msra.mxu0 0.0
    %207 = vmatprep.subr.mxu0 0.0
    %208 = vmatpush1.msra.mxu0 0.0
    %209 = vmatprep.subr.mxu0 0.0
    %210 = vmatpush1.msra.mxu0 0.0
    %211 = vmatprep.subr.mxu0 0.0
    %212 = vmatpush1.msra.mxu0 0.0
    %213 = vmatprep.subr.mxu0 0.0
    %214 = vmatpush1.msra.mxu0 0.0
    %215 = vmatprep.subr.mxu0 0.0
    %216 = vmatpush1.msra.mxu0 0.0
    %217 = vmatprep.subr.mxu0 0.0
    %218 = vmatpush1.msra.mxu0 0.0
    %219 = vmatprep.subr.mxu0 0.0
    %220 = vmatpush1.msra.mxu0 0.0
    %221 = vmatprep.subr.mxu0 0.0
    %222 = vmatpush1.msra.mxu0 0.0
    %223 = vmatprep.subr.mxu0 0.0
    %224 = vmatpush1.msra.mxu0 0.0
    %225 = vmatprep.subr.mxu0 0.0
    %226 = vmatpush1.msra.mxu0 0.0
    %227 = vmatprep.subr.mxu0 0.0
    %228 = vmatpush1.msra.mxu0 0.0
    %229 = vmatprep.subr.mxu0 0.0
    %230 = vmatpush1.msra.mxu0 0.0
    %231 = vmatprep.subr.mxu0 0.0
    %232 = vmatpush1.msra.mxu0 0.0
    %233 = vmatprep.subr.mxu0 0.0
    %234 = vmatpush1.msra.mxu0 0.0
    %235 = vmatprep.subr.mxu0 0.0
    %236 = vmatpush1.msra.mxu0 0.0
    %237 = vmatprep.subr.mxu0 0.0
    %238 = vmatpush1.msra.mxu0 0.0
    %239 = vmatprep.subr.mxu0 0.0
    %240 = vmatpush1.msra.mxu0 0.0
    %241 = vmatprep.subr.mxu0 0.0
    %242 = vmatpush1.msra.mxu0 0.0
    %243 = vmatprep.subr.mxu0 0.0
    %244 = vmatpush1.msra.mxu0 0.0
    %245 = vmatprep.subr.mxu0 0.0
    %246 = vmatpush1.msra.mxu0 0.0
    %247 = vmatprep.mubr.f32.mxu0 0.0
    %248 = vmatmul.mubr.f32.gmra.mrb[0].mxu0 %v181
    %v249 = vpop.f32.mrb[0].mxu0
    %v250 = vadd.f32 %v177, %v249
    %v251 = vpop.f32.mrb[0].mxu0
    %252 = vdwg.mxu0
    %v253 = vmul.f32 %v250, 1.442695
    %v254 = vpow.pop %v253
    %255 = vst [vmem:[#allocation11] sm:$0xff] %v254
    %v256 = vld [vmem:[#allocation7] sm:$0xff]
    %v257 = vld [vmem:[#allocation7 + $0x8] sm:$0xff]
    %v258 = vld [vmem:[#allocation7 + $0x10] sm:$0xff]
    %v259 = vld [vmem:[#allocation7 + $0x18] sm:$0xff]
    %v260 = vld [vmem:[%s4] sm:$0x1]
    %v262 = vlaneseq
    %v263 = vshrl.u32 %v262, 7
    %v264 = vsub.s32 0, %v263
    %v265 = vrot.slane %v260, %v264
    %267 = vmatprep.subr.mxu0 0.0
    %268 = vmatpush1.msra.mxu0 %v256
    %269 = vmatprep.subr.mxu0 0.0
    %270 = vmatpush1.msra.mxu0 %v257
    %271 = vmatprep.subr.mxu0 0.0
    %272 = vmatpush1.msra.mxu0 %v258
    %273 = vmatprep.subr.mxu0 0.0
    %274 = vmatpush1.msra.mxu0 %v259
    %275 = vmatprep.subr.mxu0 0.0
    %276 = vmatpush1.msra.mxu0 0.0
    %277 = vmatprep.subr.mxu0 0.0
    %278 = vmatpush1.msra.mxu0 0.0
    %279 = vmatprep.subr.mxu0 0.0
    %280 = vmatpush1.msra.mxu0 0.0
    %281 = vmatprep.subr.mxu0 0.0
    %282 = vmatpush1.msra.mxu0 0.0
    %283 = vmatprep.subr.mxu0 0.0
    %284 = vmatpush1.msra.mxu0 0.0
    %285 = vmatprep.subr.mxu0 0.0
    %286 = vmatpush1.msra.mxu0 0.0
    %287 = vmatprep.subr.mxu0 0.0
    %288 = vmatpush1.msra.mxu0 0.0
    %289 = vmatprep.subr.mxu0 0.0
    %290 = vmatpush1.msra.mxu0 0.0
    %291 = vmatprep.subr.mxu0 0.0
    %292 = vmatpush1.msra.mxu0 0.0
    %293 = vmatprep.subr.mxu0 0.0
    %294 = vmatpush1.msra.mxu0 0.0
    %295 = vmatprep.subr.mxu0 0.0
    %296 = vmatpush1.msra.mxu0 0.0
    %297 = vmatprep.subr.mxu0 0.0
    %298 = vmatpush1.msra.mxu0 0.0
    %299 = vmatprep.subr.mxu0 0.0
    %300 = vmatpush1.msra.mxu0 0.0
    %301 = vmatprep.subr.mxu0 0.0
    %302 = vmatpush1.msra.mxu0 0.0
    %303 = vmatprep.subr.mxu0 0.0
    %304 = vmatpush1.msra.mxu0 0.0
    %305 = vmatprep.subr.mxu0 0.0
    %306 = vmatpush1.msra.mxu0 0.0
    %307 = vmatprep.subr.mxu0 0.0
    %308 = vmatpush1.msra.mxu0 0.0
    %309 = vmatprep.subr.mxu0 0.0
    %310 = vmatpush1.msra.mxu0 0.0
    %311 = vmatprep.subr.mxu0 0.0
    %312 = vmatpush1.msra.mxu0 0.0
    %313 = vmatprep.subr.mxu0 0.0
    %314 = vmatpush1.msra.mxu0 0.0
    %315 = vmatprep.subr.mxu0 0.0
    %316 = vmatpush1.msra.mxu0 0.0
    %317 = vmatprep.subr.mxu0 0.0
    %318 = vmatpush1.msra.mxu0 0.0
    %319 = vmatprep.subr.mxu0 0.0
    %320 = vmatpush1.msra.mxu0 0.0
    %321 = vmatprep.subr.mxu0 0.0
    %322 = vmatpush1.msra.mxu0 0.0
    %323 = vmatprep.subr.mxu0 0.0
    %324 = vmatpush1.msra.mxu0 0.0
    %325 = vmatprep.subr.mxu0 0.0
    %326 = vmatpush1.msra.mxu0 0.0
    %327 = vmatprep.subr.mxu0 0.0
    %328 = vmatpush1.msra.mxu0 0.0
    %329 = vmatprep.subr.mxu0 0.0
    %330 = vmatpush1.msra.mxu0 0.0
    %331 = vmatprep.mubr.f32.mxu0 0.0
    %332 = vmatmul.mubr.f32.gmra.mrb[0].mxu0 %v181
    %v333 = vpop.f32.mrb[0].mxu0
    %v334 = vadd.f32 %v265, %v333
    %v335 = vpop.f32.mrb[0].mxu0
    %336 = vdwg.mxu0
    %337 = vmax.xlane.f32.xlu0 %v334
    %v338 = vpop.xlane.xlu0 %337
    %v339 = vsub.f32 -inf, %v338
    %v340 = vmul.f32 %v339, 1.442695
    %v341 = vpow.pop %v340
    %v342 = vmul.f32 %v341, 0.0
    %v343 = vsub.f32 %v334, %v338
    %v344 = vmul.f32 %v343, 1.442695
    %v345 = vpow.pop %v344
    %346 = vadd.xlane.f32.xlu0 %v345
    %v347 = vpop.xlane.xlu0 %346
    %v348 = vadd.f32 %v342, %v347
    %v349 = vrcp.pop %v348
    %v350 = vmul.f32 1.0, %v349
    %v351 = vmul.f32 %v345, %v350
    %352 = vst [vmem:[#allocation10] sm:$0xff] %v351
    // Predicated region
    $region46: #{tpu_custom_call.1} parent=1 // pred_check
      _
    $region47: #{tpu_custom_call.1} parent=1 // pred_check_branch
      %354 = sbr.rel (0) target = $region49
    $region48: #{tpu_custom_call.1} parent=1 // pred_region
      %s356 = ssub.s32 128, 128
      %357 = vsyncadd [#allocation4], %s356
      %s359 = sshll.u32 [#allocation10], 4
      %s360 = int_to_ptr.vmem [resolvable:$true] %s359
      %362 = dma.vmem_to_hbm [thread:$0]  %s360, 128, %s7, [#allocation4]
    $region49: #{tpu_custom_call.1} parent=1 // pred_fallthru
      _
    // Predicated region
    $region50: #{tpu_custom_call.1} parent=1 // pred_check
      _
    $region51: #{tpu_custom_call.1} parent=1 // pred_check_branch
      %364 = sbr.rel (0) target = $region53
    $region52: #{tpu_custom_call.1} parent=1 // pred_region
      %s366 = ssub.s32 128, 128
      %367 = vsyncadd [#allocation12], %s366
      %s369 = sshll.u32 [#allocation11], 4
      %s370 = int_to_ptr.vmem [resolvable:$true] %s369
      %372 = dma.vmem_to_hbm [thread:$0]  %s370, 128, %s8, [#allocation12]
    $region53: #{tpu_custom_call.1} parent=1 // pred_fallthru
      _
    // Predicated region
    $region54: #{tpu_custom_call.1} parent=1 // pred_check
      _
    $region55: #{tpu_custom_call.1} parent=1 // pred_check_branch
      %374 = sbr.rel (0) target = $region57
    $region56: #{tpu_custom_call.1} parent=1 // pred_region
      %375 = dma.done [#allocation4], 128
    $region57: #{tpu_custom_call.1} parent=1 // pred_fallthru
      _
    // Predicated region
    $region58: #{tpu_custom_call.1} parent=1 // pred_check
      _
    $region59: #{tpu_custom_call.1} parent=1 // pred_check_branch
      %377 = sbr.rel (0) target = $region61
    $region60: #{tpu_custom_call.1} parent=1 // pred_region
      %378 = dma.done [#allocation12], 128
    $region61: #{tpu_custom_call.1} parent=1 // pred_fallthru
      _
    %379 = vsyncpa [#allocation3], 1
    %380 = vsyncpa [#allocation6], 1
    %381 = vsyncpa [#allocation9], 1
    %382 = vsyncpa [#allocation4], 1
    %383 = vsyncpa [#allocation12], 1

// kernel: tpu_custom_call.1
$region0: #{tpu_custom_call.1}
  #allocation0 [shape = 'u32[]', space=smem, size = 0x4, offset = 0x4, fixed_abs, tag = 'smem constant byte address 0x4 - core index']
  #allocation1 [shape = 'u32[144,128]{1,0:T(1,128)}', space=vmem, size = 0x12000, scoped, tag = 'internal scratch']
  %s0 = inlined_call_operand.hbm [shape: f32[8,16], index: 0, kind: input, shape index: {}]
  %s1 = inlined_call_operand.hbm [shape: f32[16,32], index: 1, kind: input, shape index: {}]
  %s2 = inlined_call_operand.vmem [shape: f32[1,32], index: 2, kind: input, shape index: {}]
  %s3 = inlined_call_operand.hbm [shape: f32[32,128], index: 3, kind: input, shape index: {}]
  %s4 = inlined_call_operand.vmem [shape: f32[1,128], index: 4, kind: input, shape index: {}]
  %s5 = inlined_call_operand.hbm [shape: f32[32,128], index: 5, kind: input, shape index: {}]
  %s6 = inlined_call_operand.vmem [shape: f32[1,128], index: 6, kind: input, shape index: {}]
  %s7 = inlined_call_operand.hbm [shape: f32[8,128], index: 7, kind: output, shape index: {0}]
  %s8 = inlined_call_operand.hbm [shape: f32[8,128], index: 8, kind: output, shape index: {1}]
  %9 = xla_tuple %s7, %s8
  %s10 = sld [smem:[#allocation0]]
  $region62: #{tpu_custom_call.1} parent=0
    _
  %s12 = ssub.s32 1, %s10
  %s13 = scalar_select 0, %s12, %s10
  $region1: #{tpu_custom_call.1} parent=0
    #allocation2 [shape = 'u8[4096]{0}', space=vmem, size = 0x1000, scoped, tag = 'input window, operand 0, single buffered']
    #allocation3 [shape = 's32[1]{0}', space=sflag, size = 0x4, scoped, tag = 'scoped memory for tpu_custom_call.1']
    #allocation4 [shape = 's32[1]{0}', space=sflag, size = 0x4, scoped, tag = 'scoped memory for tpu_custom_call.1']
    #allocation5 [shape = 'u8[8192]{0}', space=vmem, size = 0x2000, scoped, tag = 'input window, operand 1, single buffered']
    #allocation6 [shape = 's32[1]{0}', space=sflag, size = 0x4, scoped, tag = 'scoped memory for tpu_custom_call.1']
    #allocation7 [shape = 'u8[16384]{0}', space=vmem, size = 0x4000, scoped, tag = 'input window, operand 3, single buffered']
    #allocation8 [shape = 'u8[16384]{0}', space=vmem, size = 0x4000, scoped, tag = 'input window, operand 5, single buffered']
    #allocation9 [shape = 's32[1]{0}', space=sflag, size = 0x4, scoped, tag = 'scoped memory for tpu_custom_call.1']
    #allocation10 [shape = 'u8[4096]{0}', space=vmem, size = 0x1000, scoped, tag = 'output window, operand 0, single buffered']
    #allocation11 [shape = 'u8[4096]{0}', space=vmem, size = 0x1000, scoped, tag = 'output window, operand 1, single buffered']
    #allocation12 [shape = 's32[1]{0}', space=sflag, size = 0x4, scoped, tag = 'scoped memory for tpu_custom_call.1']
    %14 = vsyncpa [#allocation3], 0
    %15 = vsyncpa [#allocation6], 0
    %16 = vsyncpa [#allocation9], 0
    %17 = vsyncpa [#allocation4], 0
    %18 = vsyncpa [#allocation12], 0
    // Predicated region
    $region2: #{tpu_custom_call.1} parent=1 // pred_check
      _
    $region3: #{tpu_custom_call.1} parent=1 // pred_check_branch
      %20 = sbr.rel (0) target = $region5
    $region4: #{tpu_custom_call.1} parent=1 // pred_region
      %s22 = ssub.s32 128, 128
      %23 = vsyncadd [#allocation3], %s22
      %s25 = sshll.u32 [#allocation2], 4
      %s26 = int_to_ptr.vmem [resolvable:$true] %s25
      %28 = dma.hbm_to_vmem [thread:$0]  %s0, 128, %s26, [#allocation3]
    $region5: #{tpu_custom_call.1} parent=1 // pred_fallthru
      _
    // Predicated region
    $region6: #{tpu_custom_call.1} parent=1 // pred_check
      _
    $region7: #{tpu_custom_call.1} parent=1 // pred_check_branch
      %30 = sbr.rel (0) target = $region9
    $region8: #{tpu_custom_call.1} parent=1 // pred_region
      %s32 = ssub.s32 256, 256
      %33 = vsyncadd [#allocation6], %s32
      %s34 = sshll.u32 [#allocation5], 4
      %s35 = int_to_ptr.vmem [resolvable:$true] %s34
      %40 = dma.hbm_to_vmem [thread:$0]  %s1, 256, %s35, [#allocation6], 128, 128, 8
    $region9: #{tpu_custom_call.1} parent=1 // pred_fallthru
      _
    // Predicated region
    $region10: #{tpu_custom_call.1} parent=1 // pred_check
      _
    $region11: #{tpu_custom_call.1} parent=1 // pred_check_branch
      %42 = sbr.rel (0) target = $region13
    $region12: #{tpu_custom_call.1} parent=1 // pred_region
      _
    $region13: #{tpu_custom_call.1} parent=1 // pred_fallthru
      _
    // Predicated region
    $region14: #{tpu_custom_call.1} parent=1 // pred_check
      _
    $region15: #{tpu_custom_call.1} parent=1 // pred_check_branch
      %44 = sbr.rel (0) target = $region17
    $region16: #{tpu_custom_call.1} parent=1 // pred_region
      %s46 = ssub.s32 512, 512
      %47 = vsyncadd [#allocation6], %s46
      %s48 = sshll.u32 [#allocation7], 4
      %s49 = int_to_ptr.vmem [resolvable:$true] %s48
      %54 = dma.hbm_to_vmem [thread:$0]  %s3, 512, %s49, [#allocation6], 128, 128, 8
    $region17: #{tpu_custom_call.1} parent=1 // pred_fallthru
      _
    // Predicated region
    $region18: #{tpu_custom_call.1} parent=1 // pred_check
      _
    $region19: #{tpu_custom_call.1} parent=1 // pred_check_branch
      %56 = sbr.rel (0) target = $region21
    $region20: #{tpu_custom_call.1} parent=1 // pred_region
      _
    $region21: #{tpu_custom_call.1} parent=1 // pred_fallthru
      _
    // Predicated region
    $region22: #{tpu_custom_call.1} parent=1 // pred_check
      _
    $region23: #{tpu_custom_call.1} parent=1 // pred_check_branch
      %58 = sbr.rel (0) target = $region25
    $region24: #{tpu_custom_call.1} parent=1 // pred_region
      %s60 = ssub.s32 512, 512
      %61 = vsyncadd [#allocation9], %s60
      %s62 = sshll.u32 [#allocation8], 4
      %s63 = int_to_ptr.vmem [resolvable:$true] %s62
      %68 = dma.hbm_to_vmem [thread:$0]  %s5, 512, %s63, [#allocation9], 128, 128, 8
    $region25: #{tpu_custom_call.1} parent=1 // pred_fallthru
      _
    // Predicated region
    $region26: #{tpu_custom_call.1} parent=1 // pred_check
      _
    $region27: #{tpu_custom_call.1} parent=1 // pred_check_branch
      %70 = sbr.rel (0) target = $region29
    $region28: #{tpu_custom_call.1} parent=1 // pred_region
      _
    $region29: #{tpu_custom_call.1} parent=1 // pred_fallthru
      _
    // Predicated region
    $region30: #{tpu_custom_call.1} parent=1 // pred_check
      _
    $region31: #{tpu_custom_call.1} parent=1 // pred_check_branch
      %72 = sbr.rel (0) target = $region33
    $region32: #{tpu_custom_call.1} parent=1 // pred_region
      %73 = dma.done [#allocation3], 128
    $region33: #{tpu_custom_call.1} parent=1 // pred_fallthru
      _
    // Predicated region
    $region34: #{tpu_custom_call.1} parent=1 // pred_check
      _
    $region35: #{tpu_custom_call.1} parent=1 // pred_check_branch
      %75 = sbr.rel (0) target = $region37
    $region36: #{tpu_custom_call.1} parent=1 // pred_region
      %76 = dma.done [#allocation6], 256
    $region37: #{tpu_custom_call.1} parent=1 // pred_fallthru
      _
    // Predicated region
    $region38: #{tpu_custom_call.1} parent=1 // pred_check
      _
    $region39: #{tpu_custom_call.1} parent=1 // pred_check_branch
      %78 = sbr.rel (0) target = $region41
    $region40: #{tpu_custom_call.1} parent=1 // pred_region
      %79 = dma.done [#allocation6], 512
    $region41: #{tpu_custom_call.1} parent=1 // pred_fallthru
      _
    // Predicated region
    $region42: #{tpu_custom_call.1} parent=1 // pred_check
      _
    $region43: #{tpu_custom_call.1} parent=1 // pred_check_branch
      %81 = sbr.rel (0) target = $region45
    $region44: #{tpu_custom_call.1} parent=1 // pred_region
      %82 = dma.done [#allocation9], 512
    $region45: #{tpu_custom_call.1} parent=1 // pred_fallthru
      _
    %v83 = vld [vmem:[#allocation2] sm:$0xff]
    %v84 = vld [vmem:[#allocation5] sm:$0xff]
    %v85 = vld [vmem:[#allocation5 + $0x8] sm:$0xff]
    %v86 = vld [vmem:[%s2] sm:$0x1]
    %v88 = vlaneseq
    %v89 = vshrl.u32 %v88, 7
    %v90 = vsub.s32 0, %v89
    %v91 = vrot.slane %v86, %v90
    %vm93 = vcmask 130048
    %v95 = vsel %vm93, %v83, 0
    %97 = vmatprep.subr.mxu0 0.0
    %98 = vmatpush1.msra.mxu0 %v84
    %99 = vmatprep.subr.mxu0 0.0
    %100 = vmatpush1.msra.mxu0 %v85
    %101 = vmatprep.subr.mxu0 0.0
    %102 = vmatpush1.msra.mxu0 0.0
    %103 = vmatprep.subr.mxu0 0.0
    %104 = vmatpush1.msra.mxu0 0.0
    %105 = vmatprep.subr.mxu0 0.0
    %106 = vmatpush1.msra.mxu0 0.0
    %107 = vmatprep.subr.mxu0 0.0
    %108 = vmatpush1.msra.mxu0 0.0
    %109 = vmatprep.subr.mxu0 0.0
    %110 = vmatpush1.msra.mxu0 0.0
    %111 = vmatprep.subr.mxu0 0.0
    %112 = vmatpush1.msra.mxu0 0.0
    %113 = vmatprep.subr.mxu0 0.0
    %114 = vmatpush1.msra.mxu0 0.0
    %115 = vmatprep.subr.mxu0 0.0
    %116 = vmatpush1.msra.mxu0 0.0
    %117 = vmatprep.subr.mxu0 0.0
    %118 = vmatpush1.msra.mxu0 0.0
    %119 = vmatprep.subr.mxu0 0.0
    %120 = vmatpush1.msra.mxu0 0.0
    %121 = vmatprep.subr.mxu0 0.0
    %122 = vmatpush1.msra.mxu0 0.0
    %123 = vmatprep.subr.mxu0 0.0
    %124 = vmatpush1.msra.mxu0 0.0
    %125 = vmatprep.subr.mxu0 0.0
    %126 = vmatpush1.msra.mxu0 0.0
    %127 = vmatprep.subr.mxu0 0.0
    %128 = vmatpush1.msra.mxu0 0.0
    %129 = vmatprep.subr.mxu0 0.0
    %130 = vmatpush1.msra.mxu0 0.0
    %131 = vmatprep.subr.mxu0 0.0
    %132 = vmatpush1.msra.mxu0 0.0
    %133 = vmatprep.subr.mxu0 0.0
    %134 = vmatpush1.msra.mxu0 0.0
    %135 = vmatprep.subr.mxu0 0.0
    %136 = vmatpush1.msra.mxu0 0.0
    %137 = vmatprep.subr.mxu0 0.0
    %138 = vmatpush1.msra.mxu0 0.0
    %139 = vmatprep.subr.mxu0 0.0
    %140 = vmatpush1.msra.mxu0 0.0
    %141 = vmatprep.subr.mxu0 0.0
    %142 = vmatpush1.msra.mxu0 0.0
    %143 = vmatprep.subr.mxu0 0.0
    %144 = vmatpush1.msra.mxu0 0.0
    %145 = vmatprep.subr.mxu0 0.0
    %146 = vmatpush1.msra.mxu0 0.0
    %147 = vmatprep.subr.mxu0 0.0
    %148 = vmatpush1.msra.mxu0 0.0
    %149 = vmatprep.subr.mxu0 0.0
    %150 = vmatpush1.msra.mxu0 0.0
    %151 = vmatprep.subr.mxu0 0.0
    %152 = vmatpush1.msra.mxu0 0.0
    %153 = vmatprep.subr.mxu0 0.0
    %154 = vmatpush1.msra.mxu0 0.0
    %155 = vmatprep.subr.mxu0 0.0
    %156 = vmatpush1.msra.mxu0 0.0
    %157 = vmatprep.subr.mxu0 0.0
    %158 = vmatpush1.msra.mxu0 0.0
    %159 = vmatprep.subr.mxu0 0.0
    %160 = vmatpush1.msra.mxu0 0.0
    %161 = vmatprep.mubr.f32.mxu0 0.0
    %162 = vmatmul.mubr.f32.gmra.mrb[0].mxu0 %v95
    %v163 = vpop.f32.mrb[0].mxu0
    %v164 = vadd.f32 %v91, %v163
    %v165 = vpop.f32.mrb[0].mxu0
    %166 = vdwg.mxu0
    %v167 = vmax.f32 %v164, 0.0
    %v168 = vld [vmem:[#allocation8] sm:$0xff]
    %v169 = vld [vmem:[#allocation8 + $0x8] sm:$0xff]
    %v170 = vld [vmem:[#allocation8 + $0x10] sm:$0xff]
    %v171 = vld [vmem:[#allocation8 + $0x18] sm:$0xff]
    %v172 = vld [vmem:[%s6] sm:$0x1]
    %v174 = vlaneseq
    %v175 = vshrl.u32 %v174, 7
    %v176 = vsub.s32 0, %v175
    %v177 = vrot.slane %v172, %v176
    %vm179 = vcmask 261120
    %v181 = vsel %vm179, %v167, 0
    %183 = vmatprep.subr.mxu0 0.0
    %184 = vmatpush1.msra.mxu0 %v168
    %185 = vmatprep.subr.mxu0 0.0
    %186 = vmatpush1.msra.mxu0 %v169
    %187 = vmatprep.subr.mxu0 0.0
    %188 = vmatpush1.msra.mxu0 %v170
    %189 = vmatprep.subr.mxu0 0.0
    %190 = vmatpush1.msra.mxu0 %v171
    %191 = vmatprep.subr.mxu0 0.0
    %192 = vmatpush1.msra.mxu0 0.0
    %193 = vmatprep.subr.mxu0 0.0
    %194 = vmatpush1.msra.mxu0 0.0
    %195 = vmatprep.subr.mxu0 0.0
    %196 = vmatpush1.msra.mxu0 0.0
    %197 = vmatprep.subr.mxu0 0.0
    %198 = vmatpush1.msra.mxu0 0.0
    %199 = vmatprep.subr.mxu0 0.0
    %200 = vmatpush1.msra.mxu0 0.0
    %201 = vmatprep.subr.mxu0 0.0
    %202 = vmatpush1.msra.mxu0 0.0
    %203 = vmatprep.subr.mxu0 0.0
    %204 = vmatpush1.msra.mxu0 0.0
    %205 = vmatprep.subr.mxu0 0.0
    %206 = vmatpush1.msra.mxu0 0.0
    %207 = vmatprep.subr.mxu0 0.0
    %208 = vmatpush1.msra.mxu0 0.0
    %209 = vmatprep.subr.mxu0 0.0
    %210 = vmatpush1.msra.mxu0 0.0
    %211 = vmatprep.subr.mxu0 0.0
    %212 = vmatpush1.msra.mxu0 0.0
    %213 = vmatprep.subr.mxu0 0.0
    %214 = vmatpush1.msra.mxu0 0.0
    %215 = vmatprep.subr.mxu0 0.0
    %216 = vmatpush1.msra.mxu0 0.0
    %217 = vmatprep.subr.mxu0 0.0
    %218 = vmatpush1.msra.mxu0 0.0
    %219 = vmatprep.subr.mxu0 0.0
    %220 = vmatpush1.msra.mxu0 0.0
    %221 = vmatprep.subr.mxu0 0.0
    %222 = vmatpush1.msra.mxu0 0.0
    %223 = vmatprep.subr.mxu0 0.0
    %224 = vmatpush1.msra.mxu0 0.0
    %225 = vmatprep.subr.mxu0 0.0
    %226 = vmatpush1.msra.mxu0 0.0
    %227 = vmatprep.subr.mxu0 0.0
    %228 = vmatpush1.msra.mxu0 0.0
    %229 = vmatprep.subr.mxu0 0.0
    %230 = vmatpush1.msra.mxu0 0.0
    %231 = vmatprep.subr.mxu0 0.0
    %232 = vmatpush1.msra.mxu0 0.0
    %233 = vmatprep.subr.mxu0 0.0
    %234 = vmatpush1.msra.mxu0 0.0
    %235 = vmatprep.subr.mxu0 0.0
    %236 = vmatpush1.msra.mxu0 0.0
    %237 = vmatprep.subr.mxu0 0.0
    %238 = vmatpush1.msra.mxu0 0.0
    %239 = vmatprep.subr.mxu0 0.0
    %240 = vmatpush1.msra.mxu0 0.0
    %241 = vmatprep.subr.mxu0 0.0
    %242 = vmatpush1.msra.mxu0 0.0
    %243 = vmatprep.subr.mxu0 0.0
    %244 = vmatpush1.msra.mxu0 0.0
    %245 = vmatprep.subr.mxu0 0.0
    %246 = vmatpush1.msra.mxu0 0.0
    %247 = vmatprep.mubr.f32.mxu0 0.0
    %248 = vmatmul.mubr.f32.gmra.mrb[0].mxu0 %v181
    %v249 = vpop.f32.mrb[0].mxu0
    %v250 = vadd.f32 %v177, %v249
    %v251 = vpop.f32.mrb[0].mxu0
    %252 = vdwg.mxu0
    %v253 = vmul.f32 %v250, 1.442695
    %v254 = vpow.pop %v253
    %255 = vst [vmem:[#allocation11] sm:$0xff] %v254
    %v256 = vld [vmem:[#allocation7] sm:$0xff]
    %v257 = vld [vmem:[#allocation7 + $0x8] sm:$0xff]
    %v258 = vld [vmem:[#allocation7 + $0x10] sm:$0xff]
    %v259 = vld [vmem:[#allocation7 + $0x18] sm:$0xff]
    %v260 = vld [vmem:[%s4] sm:$0x1]
    %v262 = vlaneseq
    %v263 = vshrl.u32 %v262, 7
    %v264 = vsub.s32 0, %v263
    %v265 = vrot.slane %v260, %v264
    %267 = vmatprep.subr.mxu0 0.0
    %268 = vmatpush1.msra.mxu0 %v256
    %269 = vmatprep.subr.mxu0 0.0
    %270 = vmatpush1.msra.mxu0 %v257
    %271 = vmatprep.subr.mxu0 0.0
    %272 = vmatpush1.msra.mxu0 %v258
    %273 = vmatprep.subr.mxu0 0.0
    %274 = vmatpush1.msra.mxu0 %v259
    %275 = vmatprep.subr.mxu0 0.0
    %276 = vmatpush1.msra.mxu0 0.0
    %277 = vmatprep.subr.mxu0 0.0
    %278 = vmatpush1.msra.mxu0 0.0
    %279 = vmatprep.subr.mxu0 0.0
    %280 = vmatpush1.msra.mxu0 0.0
    %281 = vmatprep.subr.mxu0 0.0
    %282 = vmatpush1.msra.mxu0 0.0
    %283 = vmatprep.subr.mxu0 0.0
    %284 = vmatpush1.msra.mxu0 0.0
    %285 = vmatprep.subr.mxu0 0.0
    %286 = vmatpush1.msra.mxu0 0.0
    %287 = vmatprep.subr.mxu0 0.0
    %288 = vmatpush1.msra.mxu0 0.0
    %289 = vmatprep.subr.mxu0 0.0
    %290 = vmatpush1.msra.mxu0 0.0
    %291 = vmatprep.subr.mxu0 0.0
    %292 = vmatpush1.msra.mxu0 0.0
    %293 = vmatprep.subr.mxu0 0.0
    %294 = vmatpush1.msra.mxu0 0.0
    %295 = vmatprep.subr.mxu0 0.0
    %296 = vmatpush1.msra.mxu0 0.0
    %297 = vmatprep.subr.mxu0 0.0
    %298 = vmatpush1.msra.mxu0 0.0
    %299 = vmatprep.subr.mxu0 0.0
    %300 = vmatpush1.msra.mxu0 0.0
    %301 = vmatprep.subr.mxu0 0.0
    %302 = vmatpush1.msra.mxu0 0.0
    %303 = vmatprep.subr.mxu0 0.0
    %304 = vmatpush1.msra.mxu0 0.0
    %305 = vmatprep.subr.mxu0 0.0
    %306 = vmatpush1.msra.mxu0 0.0
    %307 = vmatprep.subr.mxu0 0.0
    %308 = vmatpush1.msra.mxu0 0.0
    %309 = vmatprep.subr.mxu0 0.0
    %310 = vmatpush1.msra.mxu0 0.0
    %311 = vmatprep.subr.mxu0 0.0
    %312 = vmatpush1.msra.mxu0 0.0
    %313 = vmatprep.subr.mxu0 0.0
    %314 = vmatpush1.msra.mxu0 0.0
    %315 = vmatprep.subr.mxu0 0.0
    %316 = vmatpush1.msra.mxu0 0.0
    %317 = vmatprep.subr.mxu0 0.0
    %318 = vmatpush1.msra.mxu0 0.0
    %319 = vmatprep.subr.mxu0 0.0
    %320 = vmatpush1.msra.mxu0 0.0
    %321 = vmatprep.subr.mxu0 0.0
    %322 = vmatpush1.msra.mxu0 0.0
    %323 = vmatprep.subr.mxu0 0.0
    %324 = vmatpush1.msra.mxu0 0.0
    %325 = vmatprep.subr.mxu0 0.0
    %326 = vmatpush1.msra.mxu0 0.0
    %327 = vmatprep.subr.mxu0 0.0
    %328 = vmatpush1.msra.mxu0 0.0
    %329 = vmatprep.subr.mxu0 0.0
    %330 = vmatpush1.msra.mxu0 0.0
    %331 = vmatprep.mubr.f32.mxu0 0.0
    %332 = vmatmul.mubr.f32.gmra.mrb[0].mxu0 %v181
    %v333 = vpop.f32.mrb[0].mxu0
    %v334 = vadd.f32 %v265, %v333
    %v335 = vpop.f32.mrb[0].mxu0
    %336 = vdwg.mxu0
    %337 = vmax.xlane.f32.xlu0 %v334
    %v338 = vpop.xlane.xlu0 %337
    %v339 = vsub.f32 -inf, %v338
    %v340 = vmul.f32 %v339, 1.442695
    %v341 = vpow.pop %v340
    %v342 = vmul.f32 %v341, 0.0
    %v343 = vsub.f32 %v334, %v338
    %v344 = vmul.f32 %v343, 1.442695
    %v345 = vpow.pop %v344
    %346 = vadd.xlane.f32.xlu0 %v345
    %v347 = vpop.xlane.xlu0 %346
    %v348 = vadd.f32 %v342, %v347
    %v349 = vrcp.pop %v348
    %v350 = vmul.f32 1.0, %v349
    %v351 = vmul.f32 %v345, %v350
    %352 = vst [vmem:[#allocation10] sm:$0xff] %v351
    // Predicated region
    $region46: #{tpu_custom_call.1} parent=1 // pred_check
      _
    $region47: #{tpu_custom_call.1} parent=1 // pred_check_branch
      %354 = sbr.rel (0) target = $region49
    $region48: #{tpu_custom_call.1} parent=1 // pred_region
      %s356 = ssub.s32 128, 128
      %357 = vsyncadd [#allocation4], %s356
      %s359 = sshll.u32 [#allocation10], 4
      %s360 = int_to_ptr.vmem [resolvable:$true] %s359
      %362 = dma.vmem_to_hbm [thread:$0]  %s360, 128, %s7, [#allocation4]
    $region49: #{tpu_custom_call.1} parent=1 // pred_fallthru
      _
    // Predicated region
    $region50: #{tpu_custom_call.1} parent=1 // pred_check
      _
    $region51: #{tpu_custom_call.1} parent=1 // pred_check_branch
      %364 = sbr.rel (0) target = $region53
    $region52: #{tpu_custom_call.1} parent=1 // pred_region
      %s366 = ssub.s32 128, 128
      %367 = vsyncadd [#allocation12], %s366
      %s369 = sshll.u32 [#allocation11], 4
      %s370 = int_to_ptr.vmem [resolvable:$true] %s369
      %372 = dma.vmem_to_hbm [thread:$0]  %s370, 128, %s8, [#allocation12]
    $region53: #{tpu_custom_call.1} parent=1 // pred_fallthru
      _
    // Predicated region
    $region54: #{tpu_custom_call.1} parent=1 // pred_check
      _
    $region55: #{tpu_custom_call.1} parent=1 // pred_check_branch
      %374 = sbr.rel (0) target = $region57
    $region56: #{tpu_custom_call.1} parent=1 // pred_region
      %375 = dma.done [#allocation4], 128
    $region57: #{tpu_custom_call.1} parent=1 // pred_fallthru
      _
    // Predicated region
    $region58: #{tpu_custom_call.1} parent=1 // pred_check
      _
    $region59: #{tpu_custom_call.1} parent=1 // pred_check_branch
      %377 = sbr.rel (0) target = $region61
    $region60: #{tpu_custom_call.1} parent=1 // pred_region
      %378 = dma.done [#allocation12], 128
    $region61: #{tpu_custom_call.1} parent=1 // pred_fallthru
      _
    %379 = vsyncpa [#allocation3], 1
    %380 = vsyncpa [#allocation6], 1
    %381 = vsyncpa [#allocation9], 1
    %382 = vsyncpa [#allocation4], 1
    %383 = vsyncpa [#allocation12], 1

</llo_original>
